<compile_context>
chip_gen: v6e
topology: v6e:2x2x1
jax: 0.10.0
libtpu: 0.0.40
codegen_flags: <defaults>
</compile_context>

<pallas_src>
import functools

import jax
import jax.numpy as jnp
from jax.experimental import pallas as pl
from jax.experimental.pallas import tpu as pltpu


def _integrate_kernel(x_ref, out_ref, *, dt, half_dt):
    """x_ref: (3, L, TILE_B) = [q | qdot | qddot]; out_ref: (2, L, TILE_B)."""
    qd = x_ref[1, :, :]
    qdn = qd + x_ref[2, :, :] * dt            # qdot_new = qdot + qddot * dt
    # (qd + qdn) * (0.5*dt) is bit-identical to 0.5*(qd + qdn)*dt in f32
    # (both intermediates are exact scalings), and saves one VPU multiply.
    out_ref[0, :, :] = x_ref[0, :, :] + (qd + qdn) * half_dt
    out_ref[1, :, :] = qdn


def _pick_tile_b(B):
    # Big lane-dense tiles amortize the ~0.35 us per-grid-step overhead while
    # staying far under even v7x's 32 MiB scoped VMEM:
    #   (3 + 2) slabs * 2 buffers * 8 sublanes * TILE_B * 4 B ~= 1.3 MiB @ 4096.
    if B <= 4096:
        return B            # single block; full-extent last dim is always legal
    return 4096             # multiple of 128; ragged tail block is masked


def model_forward(x, *, num_links, time_step):
    """x: (B, 3*num_links) float32 -> (B, 2*num_links) float32 via Pallas."""
    B, C = x.shape
    L = num_links
    assert C == 3 * L, "x must hold [q | qdot | qddot]"

    # time_step is a constructor constant of the module, so baking it in is
    # fine.  If it varied per call, pass it as an SMEM scalar instead to avoid
    # Mosaic recompiles.
    dt = float(time_step)
    half_dt = 0.5 * dt

    # Layout plumbing in the wrapper (free reshape + one transpose): component
    # axis leading, batch on the lane axis.
    xt = jnp.transpose(x.reshape(B, 3, L), (1, 2, 0))           # (3, L, B)

    tile_b = _pick_tile_b(B)
    grid = (pl.cdiv(B, tile_b),)

    out_t = pl.pallas_call(
        functools.partial(_integrate_kernel, dt=dt, half_dt=half_dt),
        out_shape=jax.ShapeDtypeStruct((2, L, B), x.dtype),
        grid=grid,
        in_specs=[pl.BlockSpec((3, L, tile_b), lambda i: (0, 0, i))],
        out_specs=pl.BlockSpec((2, L, tile_b), lambda i: (0, 0, i)),
        compiler_params=pltpu.CompilerParams(
            dimension_semantics=("parallel",)),
    )(xt)                                                        # (2, L, B)

    # Back to the module's external layout: (B, 2L) = [q_new | qdot_new].
    return jnp.transpose(out_t, (2, 0, 1)).reshape(B, 2 * L)


def model_forward_ref(x, *, num_links, time_step):
    """Pure-JAX reference mirroring the PyTorch arithmetic.

    For genuinely tiny problem sizes prefer this fused-by-XLA path at the call
    site: a standalone pallas_call launch costs more than the VPU work itself.
    """
    L = num_links
    q_old = x[:, 0:L]
    qdot_old = x[:, L:2 * L]
    qddot = x[:, 2 * L:3 * L]
    qdot_new = qdot_old + qddot * time_step
    q_new = q_old + 0.5 * (qdot_old + qdot_new) * time_step
    return jnp.concatenate([q_new, qdot_new], axis=1)


if __name__ == "__main__":
    num_links = 4
    time_step = 0.05
    batch = 8

    key = jax.random.PRNGKey(0)
    x = jax.random.normal(key, (batch, 3 * num_links), dtype=jnp.float32)

    out = model_forward(x, num_links=num_links, time_step=time_step)
    out = jax.block_until_ready(out)

    ref = model_forward_ref(x, num_links=num_links, time_step=time_step)
    assert out.shape == (batch, 2 * num_links)
    assert jnp.allclose(out, ref, atol=1e-6, rtol=1e-6), "mismatch vs reference"

    print("KERNEL_OK")
</pallas_src>

<mosaic_0001>
module attributes {stable_mosaic.version = 11 : i64} {
  func.func @_integrate_kernel(%arg0: i32, %arg1: memref<3x4x8xf32, #tpu.memory_space<vmem>>, %arg2: memref<2x4x8xf32, #tpu.memory_space<vmem>>) attributes {dimension_semantics = [#tpu.dimension_semantics<parallel>], iteration_bounds = array<i64: 1>, scalar_prefetch = 0 : i64, scratch_operands = 0 : i64, tpu.core_type = #tpu.core_type<tc>, window_params = [{transform_indices = @transform_0, window_bounds = array<i64: 3, 4, 8>}, {transform_indices = @transform_1, window_bounds = array<i64: 2, 4, 8>}]} {
    %c1 = arith.constant 1 : index
    %c0 = arith.constant 0 : index
    %c0_0 = arith.constant 0 : index
    %0 = vector.load %arg1[%c1, %c0, %c0_0] : memref<3x4x8xf32, #tpu.memory_space<vmem>>, vector<1x4x8xf32>
    %1 = vector.shape_cast %0 : vector<1x4x8xf32> to vector<4x8xf32>
    %c2 = arith.constant 2 : index
    %c0_1 = arith.constant 0 : index
    %c0_2 = arith.constant 0 : index
    %2 = vector.load %arg1[%c2, %c0_1, %c0_2] : memref<3x4x8xf32, #tpu.memory_space<vmem>>, vector<1x4x8xf32>
    %3 = vector.shape_cast %2 : vector<1x4x8xf32> to vector<4x8xf32>
    %cst = arith.constant 5.000000e-02 : f32
    %4 = vector.broadcast %cst : f32 to vector<4x8xf32>
    %5 = arith.mulf %3, %4 : vector<4x8xf32>
    %6 = arith.addf %1, %5 : vector<4x8xf32>
    %c0_3 = arith.constant 0 : index
    %c0_4 = arith.constant 0 : index
    %c0_5 = arith.constant 0 : index
    %7 = vector.load %arg1[%c0_3, %c0_4, %c0_5] : memref<3x4x8xf32, #tpu.memory_space<vmem>>, vector<1x4x8xf32>
    %8 = vector.shape_cast %7 : vector<1x4x8xf32> to vector<4x8xf32>
    %9 = arith.addf %1, %6 : vector<4x8xf32>
    %cst_6 = arith.constant 2.500000e-02 : f32
    %10 = vector.broadcast %cst_6 : f32 to vector<4x8xf32>
    %11 = arith.mulf %9, %10 : vector<4x8xf32>
    %12 = arith.addf %8, %11 : vector<4x8xf32>
    %c0_7 = arith.constant 0 : index
    %c0_8 = arith.constant 0 : index
    %c0_9 = arith.constant 0 : index
    %13 = vector.load %arg2[%c0_7, %c0_8, %c0_9] : memref<2x4x8xf32, #tpu.memory_space<vmem>>, vector<1x4x8xf32>
    %14 = vector.shape_cast %13 : vector<1x4x8xf32> to vector<4x8xf32>
    %15 = vector.shape_cast %12 : vector<4x8xf32> to vector<1x4x8xf32>
    tpu.vector_store %arg2[%c0_7, %c0_8, %c0_9], %15 {strides = array<i32>} : memref<2x4x8xf32, #tpu.memory_space<vmem>>, vector<1x4x8xf32>,
    %c1_10 = arith.constant 1 : index
    %c0_11 = arith.constant 0 : index
    %c0_12 = arith.constant 0 : index
    %16 = vector.load %arg2[%c1_10, %c0_11, %c0_12] : memref<2x4x8xf32, #tpu.memory_space<vmem>>, vector<1x4x8xf32>
    %17 = vector.shape_cast %16 : vector<1x4x8xf32> to vector<4x8xf32>
    %18 = vector.shape_cast %6 : vector<4x8xf32> to vector<1x4x8xf32>
    tpu.vector_store %arg2[%c1_10, %c0_11, %c0_12], %18 {strides = array<i32>} : memref<2x4x8xf32, #tpu.memory_space<vmem>>, vector<1x4x8xf32>,
    return
  }
  func.func @transform_0(%arg0: i32) -> (i32, i32, i32) {
    %c0_i32 = arith.constant 0 : i32
    %c0_i32_0 = arith.constant 0 : i32
    %c0_i32_1 = arith.constant 0 : i32
    return %c0_i32, %c0_i32_0, %arg0 : i32, i32, i32
  }
  func.func @transform_1(%arg0: i32) -> (i32, i32, i32) {
    %c0_i32 = arith.constant 0 : i32
    %c0_i32_0 = arith.constant 0 : i32
    %c0_i32_1 = arith.constant 0 : i32
    return %c0_i32, %c0_i32_0, %arg0 : i32, i32, i32
  }
}

</mosaic_0001>

<llo_original>
// kernel: tpu_custom_call.1
$region0: #{tpu_custom_call.1}
  #allocation0 [shape = 'u32[]', space=smem, size = 0x4, offset = 0x4, fixed_abs, tag = 'smem constant byte address 0x4 - core index']
  #allocation1 [shape = 'u32[144,128]{1,0:T(1,128)}', space=vmem, size = 0x12000, scoped, tag = 'internal scratch']
  %s0 = inlined_call_operand.hbm [shape: f32[3,4,8], index: 0, kind: input, shape index: {}]
  %s1 = inlined_call_operand.hbm [shape: f32[2,4,8], index: 1, kind: output, shape index: {}]
  %s2 = sld [smem:[#allocation0]]
  $region18: #{tpu_custom_call.1} parent=0
    _
  %s4 = ssub.s32 1, %s2
  %s5 = scalar_select 0, %s4, %s2
  $region1: #{tpu_custom_call.1} parent=0
    #allocation2 [shape = 'u8[6144]{0}', space=vmem, size = 0x1800, scoped, tag = 'input window, operand 0, single buffered']
    #allocation3 [shape = 's32[1]{0}', space=sflag, size = 0x4, scoped, tag = 'scoped memory for tpu_custom_call.1']
    #allocation4 [shape = 's32[1]{0}', space=sflag, size = 0x4, scoped, tag = 'scoped memory for tpu_custom_call.1']
    #allocation5 [shape = 'u8[4096]{0}', space=vmem, size = 0x1000, scoped, tag = 'output window, operand 0, single buffered']
    %6 = vsyncpa [#allocation3], 0
    %7 = vsyncpa [#allocation4], 0
    // Predicated region
    $region2: #{tpu_custom_call.1} parent=1 // pred_check
      _
    $region3: #{tpu_custom_call.1} parent=1 // pred_check_branch
      %9 = sbr.rel (0) target = $region5
    $region4: #{tpu_custom_call.1} parent=1 // pred_region
      %s11 = ssub.s32 192, 192
      %12 = vsyncadd [#allocation3], %s11
      %s13 = sshll.u32 [#allocation2], 4
      %s14 = int_to_ptr.vmem [resolvable:$true] %s13
      %19 = dma.hbm_to_vmem [thread:$0]  %s0, 192, %s14, [#allocation3], 64, 64, 4
    $region5: #{tpu_custom_call.1} parent=1 // pred_fallthru
      _
    // Predicated region
    $region6: #{tpu_custom_call.1} parent=1 // pred_check
      _
    $region7: #{tpu_custom_call.1} parent=1 // pred_check_branch
      %21 = sbr.rel (0) target = $region9
    $region8: #{tpu_custom_call.1} parent=1 // pred_region
      %22 = dma.done [#allocation3], 192
    $region9: #{tpu_custom_call.1} parent=1 // pred_fallthru
      _
    %s23 = scalar_lea.vmem [#allocation2], 4
    %v24 = vld [vmem:[%s23] sm:$0xf]
    %s25 = scalar_lea.vmem [#allocation2], 8
    %v26 = vld [vmem:[%s25] sm:$0xf]
    %v27 = vmul.f32 %v26, 0.05
    %v28 = vadd.f32 %v24, %v27
    %v29 = vld [vmem:[#allocation2] sm:$0xf]
    %v30 = vadd.f32 %v24, %v28
    %v31 = vmul.f32 %v30, 0.025
    %v32 = vadd.f32 %v29, %v31
    %vm33 = vcmask 60416
    %34 = vst.msk [vmem:[#allocation5] sm:$0xf] %vm33, %v32
    %s35 = scalar_lea.vmem [#allocation5], 4
    %36 = vst.msk [vmem:[%s35] sm:$0xf] %vm33, %v28
    // Predicated region
    $region10: #{tpu_custom_call.1} parent=1 // pred_check
      _
    $region11: #{tpu_custom_call.1} parent=1 // pred_check_branch
      %38 = sbr.rel (0) target = $region13
    $region12: #{tpu_custom_call.1} parent=1 // pred_region
      %s40 = ssub.s32 128, 128
      %41 = vsyncadd [#allocation4], %s40
      %s42 = sshll.u32 [#allocation5], 4
      %s43 = int_to_ptr.vmem [resolvable:$true] %s42
      %48 = dma.vmem_to_hbm [thread:$0]  %s43, 128, %s1, [#allocation4], 64, 64, 4
    $region13: #{tpu_custom_call.1} parent=1 // pred_fallthru
      _
    // Predicated region
    $region14: #{tpu_custom_call.1} parent=1 // pred_check
      _
    $region15: #{tpu_custom_call.1} parent=1 // pred_check_branch
      %50 = sbr.rel (0) target = $region17
    $region16: #{tpu_custom_call.1} parent=1 // pred_region
      %51 = dma.done [#allocation4], 128
    $region17: #{tpu_custom_call.1} parent=1 // pred_fallthru
      _
    %52 = vsyncpa [#allocation3], 1
    %53 = vsyncpa [#allocation4], 1

</llo_original>
